<compile_context>
chip_gen: v5e
topology: v5e:2x2
jax: 0.10.0
libtpu: 0.0.40
codegen_flags: <defaults>
</compile_context>

<pallas_src>
import functools

import numpy as np

import jax
import jax.numpy as jnp
from jax import lax
from jax.experimental import pallas as pl
from jax.experimental.pallas import tpu as pltpu


def _round_up(x, m):
    return ((x + m - 1) // m) * m


def _focal_loss_kernel(x_ref, t_ref, out_ref, *, gamma, alpha_vals, C, L, tls,
                       need_mask):
    """One (b, j) grid step over a dense (tb, C, tls, 128) slab of logits.

    x_ref  : (tb, C, tls, 128)  logits (class axis is a leading, non-layout dim)
    t_ref  : (tb, tls, 128)     int32 class ids
    out_ref: (1, 1, 1, 1)       f32 partial focal-loss sum for this block
    """
    use_alpha = alpha_vals is not None
    t = t_ref[...]                                          # (tb, tls, 128)

    # Running max over the class axis: C-1 dense elementwise maxima (VALU
    # slots, no XLU sublane reduce, no padded vregs).
    m = x_ref[:, 0].astype(jnp.float32)                     # (tb, tls, 128)
    for c in range(1, C):
        m = jnp.maximum(m, x_ref[:, c].astype(jnp.float32))

    # Single unrolled pass over classes: accumulate sum(exp(z)) and select the
    # target class's shifted logit / exp / alpha with elementwise compares.
    # No (C, ...) one-hot tensor is ever materialized.
    z0 = x_ref[:, 0].astype(jnp.float32) - m
    e0 = jnp.exp(z0)
    sel = t == 0
    sumexp = e0
    zt = jnp.where(sel, z0, 0.0)
    et = jnp.where(sel, e0, 0.0)
    if use_alpha:
        at = jnp.where(sel, alpha_vals[0], 1.0)             # scalar constants
    for c in range(1, C):
        z_c = x_ref[:, c].astype(jnp.float32) - m
        e_c = jnp.exp(z_c)
        sumexp = sumexp + e_c
        sel = t == c
        zt = jnp.where(sel, z_c, zt)
        et = jnp.where(sel, e_c, et)
        if use_alpha:
            at = jnp.where(sel, alpha_vals[c], at)

    logpt = zt - jnp.log(sumexp)                            # (tb, tls, 128)
    # Reuse exp(z_target): pt = exp(z_t) / sum(exp).  Approximate EUP
    # reciprocal is far cheaper than a second full-width exp.
    pt = et * pl.reciprocal(sumexp, approx=True)
    if use_alpha:
        logpt = logpt * at

    # gamma stays a Python number: integer gamma lowers to multiplies.
    loss = -1.0 * (1.0 - pt) ** gamma * logpt               # (tb, tls, 128)

    if need_mask:
        # Mask padded / over-covered spatial positions (same for every image
        # in the block); applied last so NaN/Inf from stale VMEM cannot leak.
        j = pl.program_id(1)
        row = lax.broadcasted_iota(jnp.int32, (tls, 128), 0)
        lane = lax.broadcasted_iota(jnp.int32, (tls, 128), 1)
        flat = (j * tls + row) * 128 + lane
        loss = jnp.where(flat < L, loss, 0.0)

    out_ref[...] = jnp.sum(loss).reshape(1, 1, 1, 1)


class FocalLoss:
    """JAX/Pallas equivalent of the PyTorch FocalLoss module."""

    def __init__(self, gamma=1, alpha=None, size_average=True, block_bytes=None):
        self.gamma = gamma
        self.size_average = size_average
        self.block_bytes = block_bytes  # logits bytes per block (None = auto)
        if isinstance(alpha, (float, int)) and not isinstance(alpha, bool):
            # NOTE: the scalar-alpha form is binary ([alpha, 1-alpha]); using
            # it with C != 2 raises a clear ValueError at call time.
            self.alpha = jnp.array([alpha, 1.0 - alpha], dtype=jnp.float32)
        elif isinstance(alpha, (list, tuple)):
            self.alpha = jnp.array(alpha, dtype=jnp.float32)
        elif alpha is None:
            self.alpha = None
        else:
            self.alpha = jnp.asarray(alpha, dtype=jnp.float32)

    def __call__(self, logits, target):
        if logits.ndim > 2:
            B, C = logits.shape[0], logits.shape[1]
            x = logits.reshape(B, C, -1)                       # (B, C, L)
            tgt = target.reshape(B, -1).astype(jnp.int32)      # (B, L)
        else:
            # TODO(synk): the 2-D (N, C) path pays one extra HBM read+write
            # pass for this transpose; fold it into the kernel (VMEM tile
            # transpose) if this path ever becomes hot.
            N, C = logits.shape
            x = jnp.transpose(logits, (1, 0)).reshape(1, C, N)
            tgt = target.reshape(1, -1).astype(jnp.int32)
            B = 1
        L = x.shape[-1]

        use_alpha = self.alpha is not None
        if use_alpha:
            # alpha is module config -> concrete; bake the per-class weights
            # into the kernel as scalar constants (cheaper than SMEM/VMEM).
            # TODO(synk): a traced alpha would need an SMEM scalar-prefetch
            # operand instead; not supported here.
            alpha_vals = tuple(float(v) for v in np.asarray(self.alpha))
            if len(alpha_vals) != C:
                raise ValueError(
                    f"alpha has {len(alpha_vals)} entries but input has {C} "
                    f"classes (scalar alpha only supports binary C=2)")
        else:
            alpha_vals = None

        itemsize = jnp.dtype(x.dtype).itemsize

        # ---- dense (rows, 128) spatial layout -----------------------------
        Lp = _round_up(L, 128)
        if Lp != L:
            x = jnp.pad(x, ((0, 0), (0, 0), (0, Lp - L)))
            tgt = jnp.pad(tgt, ((0, 0), (0, Lp - L)))
        nS = Lp // 128
        x = x.reshape(B, C, nS, 128)
        tgt = tgt.reshape(B, nS, 128)

        # ---- generation-aware block sizing --------------------------------
        try:
            vmem_cap = int(pltpu.get_tpu_info().vmem_capacity_bytes)
        except Exception:
            vmem_cap = 64 * 1024 * 1024          # safe for every generation
        block_bytes = self.block_bytes or max(1 << 20,
                                              min(16 << 20, vmem_cap // 16))

        bytes_per_row = C * 128 * itemsize       # one (C, 1, 128) logits row
        rows_cap = max(8, (block_bytes // max(1, bytes_per_row)) // 8 * 8)
        if nS <= rows_cap:
            # Whole image fits: fold batch to amortize per-step overhead, but
            # keep ~8 grid steps when blocks would still be >= 1 MiB.
            tls = nS
            per_image = C * nS * 128 * itemsize
            tb = int(max(1, min(B, block_bytes // max(1, per_image))))
            while tb > 1 and pl.cdiv(B, tb) < 8 and (tb // 2) * per_image >= (1 << 20):
                tb //= 2
            while B % tb:                        # keep tb a divisor of B
                tb -= 1
        else:
            tls = rows_cap                       # multiple of 8 (layout legal)
            tb = 1

        nB, nJ = pl.cdiv(B, tb), pl.cdiv(nS, tls)
        # v7x megacore: guarantee >=2 parallel grid steps whenever possible.
        if nB * nJ < 2:
            if B >= 2:
                tb = max(1, B // 2)
                while B % tb:
                    tb -= 1
            elif nS >= 2:
                tls_half = min(nS, max(8, _round_up((nS + 1) // 2, 8)))
                if tls_half < nS:
                    tls = tls_half
            nB, nJ = pl.cdiv(B, tb), pl.cdiv(nS, tls)

        need_mask = (nJ * tls * 128) > L

        # VMEM budget: 2x double-buffered inputs + loaded block + f32 temps.
        x_blk = tb * C * tls * 128 * itemsize
        t_blk = tb * tls * 128 * 4
        slab = tb * tls * 128 * 4
        est = 2 * (x_blk + t_blk) + x_blk + 12 * slab
        vmem_limit = int(min(vmem_cap * 3 // 4, max(32 << 20, 2 * est)))

        kernel = functools.partial(
            _focal_loss_kernel, gamma=self.gamma, alpha_vals=alpha_vals,
            C=C, L=L, tls=tls, need_mask=need_mask)

        partials = pl.pallas_call(
            kernel,
            out_shape=jax.ShapeDtypeStruct((nB, nJ, 1, 1), jnp.float32),
            grid_spec=pltpu.PrefetchScalarGridSpec(
                num_scalar_prefetch=0,
                grid=(nB, nJ),
                in_specs=[
                    pl.BlockSpec((tb, C, tls, 128), lambda b, j: (b, 0, j, 0)),
                    pl.BlockSpec((tb, tls, 128), lambda b, j: (b, j, 0)),
                ],
                out_specs=pl.BlockSpec((1, 1, 1, 1),
                                       lambda b, j: (b, j, 0, 0)),
            ),
            compiler_params=pltpu.CompilerParams(
                dimension_semantics=("parallel", "parallel"),
                vmem_limit_bytes=vmem_limit),
        )(x, tgt)

        total = jnp.sum(partials)                # tiny (nB*nJ,) reduce in XLA
        if self.size_average:
            total = total / jnp.float32(B * L)
        return total


def _focal_loss_ref(logits, target, gamma, alpha, size_average):
    """Pure-JAX reference mirroring the PyTorch forward."""
    if logits.ndim > 2:
        B, C = logits.shape[0], logits.shape[1]
        logits = logits.reshape(B, C, -1)
        logits = jnp.transpose(logits, (0, 2, 1)).reshape(-1, C)
    N, C = logits.shape
    target = target.reshape(-1).astype(jnp.int32)
    logp = jax.nn.log_softmax(logits.astype(jnp.float32), axis=-1)
    logpt = jnp.take_along_axis(logp, target[:, None], axis=1)[:, 0]
    pt = jnp.exp(logpt)
    if alpha is not None:
        at = jnp.take(alpha, target)
        logpt = logpt * at
    loss = -1.0 * (1.0 - pt) ** gamma * logpt
    return jnp.mean(loss) if size_average else jnp.sum(loss)


if __name__ == "__main__":
    key = jax.random.PRNGKey(0)
    kx, kt, kx2, kt2, kx3, kt3, kx4, kt4 = jax.random.split(key, 8)

    # Approx EUP reciprocal trades ~1e-4 relative error for one fewer exp.
    RTOL, ATOL = 2e-3, 2e-4

    # 1) NCHW input, default module config: gamma=1, alpha=None, mean.
    B, C, H, W = 2, 4, 16, 16
    x = jax.random.normal(kx, (B, C, H, W), dtype=jnp.float32)
    target = jax.random.randint(kt, (B, H, W), 0, C, dtype=jnp.int32)
    fl = FocalLoss(gamma=1, alpha=None, size_average=True)
    loss = fl(x, target)
    jax.block_until_ready(loss)
    ref = _focal_loss_ref(x, target, gamma=1, alpha=None, size_average=True)
    assert jnp.allclose(loss, ref, rtol=RTOL, atol=ATOL), (loss, ref)

    # 2) Per-class alpha weighting + gamma=2 + sum reduction.
    alpha_list = [0.1, 0.2, 0.3, 0.4]
    fl2 = FocalLoss(gamma=2, alpha=alpha_list, size_average=False)
    loss2 = fl2(x, target)
    jax.block_until_ready(loss2)
    ref2 = _focal_loss_ref(x, target, gamma=2,
                           alpha=jnp.array(alpha_list, jnp.float32),
                           size_average=False)
    assert jnp.allclose(loss2, ref2, rtol=RTOL, atol=ATOL), (loss2, ref2)

    # 3) Plain 2-D (N, C) input path with scalar alpha (binary).
    N2, C2 = 50, 2
    x2 = jax.random.normal(kx2, (N2, C2), dtype=jnp.float32)
    t2 = jax.random.randint(kt2, (N2,), 0, C2, dtype=jnp.int32)
    fl3 = FocalLoss(gamma=1, alpha=0.25, size_average=True)
    loss3 = fl3(x2, t2)
    jax.block_until_ready(loss3)
    ref3 = _focal_loss_ref(x2, t2, gamma=1,
                           alpha=jnp.array([0.25, 0.75], jnp.float32),
                           size_average=True)
    assert jnp.allclose(loss3, ref3, rtol=RTOL, atol=ATOL), (loss3, ref3)

    # 4) Multi-spatial-tile + ragged-tail masked path (tiny block budget).
    B4, C4, H4, W4 = 1, 3, 37, 37           # L = 1369: >8 rows, not /128
    x4 = jax.random.normal(kx3, (B4, C4, H4, W4), dtype=jnp.float32)
    t4 = jax.random.randint(kt3, (B4, H4, W4), 0, C4, dtype=jnp.int32)
    fl4 = FocalLoss(gamma=2, alpha=None, size_average=True, block_bytes=4096)
    loss4 = fl4(x4, t4)
    jax.block_until_ready(loss4)
    ref4 = _focal_loss_ref(x4, t4, gamma=2, alpha=None, size_average=True)
    assert jnp.allclose(loss4, ref4, rtol=RTOL, atol=ATOL), (loss4, ref4)

    # 5) Batch-folded blocks (tb > 1) with padding + alpha.
    B5, C5, H5, W5 = 4, 2, 8, 8              # L = 64 -> padded to 128
    x5 = jax.random.normal(kx4, (B5, C5, H5, W5), dtype=jnp.float32)
    t5 = jax.random.randint(kt4, (B5, H5, W5), 0, C5, dtype=jnp.int32)
    fl5 = FocalLoss(gamma=1, alpha=[0.3, 0.7], size_average=True)
    loss5 = fl5(x5, t5)
    jax.block_until_ready(loss5)
    ref5 = _focal_loss_ref(x5, t5, gamma=1,
                           alpha=jnp.array([0.3, 0.7], jnp.float32),
                           size_average=True)
    assert jnp.allclose(loss5, ref5, rtol=RTOL, atol=ATOL), (loss5, ref5)

    print("KERNEL_OK")
</pallas_src>

<mosaic_0001>
module attributes {stable_mosaic.version = 11 : i64} {
  func.func @_focal_loss_kernel(%arg0: i32, %arg1: i32, %arg2: memref<1x4x2x128xf32, #tpu.memory_space<vmem>>, %arg3: memref<1x2x128xi32, #tpu.memory_space<vmem>>, %arg4: memref<1x1x1x1xf32, #tpu.memory_space<vmem>>) attributes {dimension_semantics = [#tpu.dimension_semantics<parallel>, #tpu.dimension_semantics<parallel>], iteration_bounds = array<i64: 2, 1>, scalar_prefetch = 0 : i64, scratch_operands = 0 : i64, tpu.core_type = #tpu.core_type<tc>, window_params = [{transform_indices = @transform_0, window_bounds = array<i64: 1, 4, 2, 128>}, {transform_indices = @transform_1, window_bounds = array<i64: 1, 2, 128>}, {transform_indices = @transform_2, window_bounds = array<i64: 1, 1, 1, 1>}]} {
    %c0 = arith.constant 0 : index
    %c0_0 = arith.constant 0 : index
    %c0_1 = arith.constant 0 : index
    %0 = vector.load %arg3[%c0, %c0_0, %c0_1] : memref<1x2x128xi32, #tpu.memory_space<vmem>>, vector<1x2x128xi32>
    %c0_2 = arith.constant 0 : index
    %c0_3 = arith.constant 0 : index
    %c0_4 = arith.constant 0 : index
    %c0_5 = arith.constant 0 : index
    %1 = vector.load %arg2[%c0_2, %c0_3, %c0_4, %c0_5] : memref<1x4x2x128xf32, #tpu.memory_space<vmem>>, vector<1x1x2x128xf32>
    %2 = vector.shape_cast %1 : vector<1x1x2x128xf32> to vector<1x2x128xf32>
    %c0_6 = arith.constant 0 : index
    %c1 = arith.constant 1 : index
    %c0_7 = arith.constant 0 : index
    %c0_8 = arith.constant 0 : index
    %3 = vector.load %arg2[%c0_6, %c1, %c0_7, %c0_8] : memref<1x4x2x128xf32, #tpu.memory_space<vmem>>, vector<1x1x2x128xf32>
    %4 = vector.shape_cast %3 : vector<1x1x2x128xf32> to vector<1x2x128xf32>
    %5 = arith.maximumf %2, %4 : vector<1x2x128xf32>
    %c0_9 = arith.constant 0 : index
    %c2 = arith.constant 2 : index
    %c0_10 = arith.constant 0 : index
    %c0_11 = arith.constant 0 : index
    %6 = vector.load %arg2[%c0_9, %c2, %c0_10, %c0_11] : memref<1x4x2x128xf32, #tpu.memory_space<vmem>>, vector<1x1x2x128xf32>
    %7 = vector.shape_cast %6 : vector<1x1x2x128xf32> to vector<1x2x128xf32>
    %8 = arith.maximumf %5, %7 : vector<1x2x128xf32>
    %c0_12 = arith.constant 0 : index
    %c3 = arith.constant 3 : index
    %c0_13 = arith.constant 0 : index
    %c0_14 = arith.constant 0 : index
    %9 = vector.load %arg2[%c0_12, %c3, %c0_13, %c0_14] : memref<1x4x2x128xf32, #tpu.memory_space<vmem>>, vector<1x1x2x128xf32>
    %10 = vector.shape_cast %9 : vector<1x1x2x128xf32> to vector<1x2x128xf32>
    %11 = arith.maximumf %8, %10 : vector<1x2x128xf32>
    %c0_15 = arith.constant 0 : index
    %c0_16 = arith.constant 0 : index
    %c0_17 = arith.constant 0 : index
    %c0_18 = arith.constant 0 : index
    %12 = vector.load %arg2[%c0_15, %c0_16, %c0_17, %c0_18] : memref<1x4x2x128xf32, #tpu.memory_space<vmem>>, vector<1x1x2x128xf32>
    %13 = vector.shape_cast %12 : vector<1x1x2x128xf32> to vector<1x2x128xf32>
    %14 = arith.subf %13, %11 : vector<1x2x128xf32>
    %15 = math.exp %14 : vector<1x2x128xf32>
    %c0_i32 = arith.constant 0 : i32
    %16 = vector.broadcast %c0_i32 : i32 to vector<1x2x128xi32>
    %17 = arith.cmpi eq, %0, %16 : vector<1x2x128xi32>
    %cst = arith.constant 0.000000e+00 : f32
    %18 = vector.broadcast %cst : f32 to vector<1x2x128xf32>
    %19 = arith.select %17, %14, %18 : vector<1x2x128xi1>, vector<1x2x128xf32>
    %cst_19 = arith.constant 0.000000e+00 : f32
    %20 = vector.broadcast %cst_19 : f32 to vector<1x2x128xf32>
    %21 = arith.select %17, %15, %20 : vector<1x2x128xi1>, vector<1x2x128xf32>
    %c0_20 = arith.constant 0 : index
    %c1_21 = arith.constant 1 : index
    %c0_22 = arith.constant 0 : index
    %c0_23 = arith.constant 0 : index
    %22 = vector.load %arg2[%c0_20, %c1_21, %c0_22, %c0_23] : memref<1x4x2x128xf32, #tpu.memory_space<vmem>>, vector<1x1x2x128xf32>
    %23 = vector.shape_cast %22 : vector<1x1x2x128xf32> to vector<1x2x128xf32>
    %24 = arith.subf %23, %11 : vector<1x2x128xf32>
    %25 = math.exp %24 : vector<1x2x128xf32>
    %26 = arith.addf %15, %25 : vector<1x2x128xf32>
    %c1_i32 = arith.constant 1 : i32
    %27 = vector.broadcast %c1_i32 : i32 to vector<1x2x128xi32>
    %28 = arith.cmpi eq, %0, %27 : vector<1x2x128xi32>
    %29 = arith.select %28, %24, %19 : vector<1x2x128xi1>, vector<1x2x128xf32>
    %30 = arith.select %28, %25, %21 : vector<1x2x128xi1>, vector<1x2x128xf32>
    %c0_24 = arith.constant 0 : index
    %c2_25 = arith.constant 2 : index
    %c0_26 = arith.constant 0 : index
    %c0_27 = arith.constant 0 : index
    %31 = vector.load %arg2[%c0_24, %c2_25, %c0_26, %c0_27] : memref<1x4x2x128xf32, #tpu.memory_space<vmem>>, vector<1x1x2x128xf32>
    %32 = vector.shape_cast %31 : vector<1x1x2x128xf32> to vector<1x2x128xf32>
    %33 = arith.subf %32, %11 : vector<1x2x128xf32>
    %34 = math.exp %33 : vector<1x2x128xf32>
    %35 = arith.addf %26, %34 : vector<1x2x128xf32>
    %c2_i32 = arith.constant 2 : i32
    %36 = vector.broadcast %c2_i32 : i32 to vector<1x2x128xi32>
    %37 = arith.cmpi eq, %0, %36 : vector<1x2x128xi32>
    %38 = arith.select %37, %33, %29 : vector<1x2x128xi1>, vector<1x2x128xf32>
    %39 = arith.select %37, %34, %30 : vector<1x2x128xi1>, vector<1x2x128xf32>
    %c0_28 = arith.constant 0 : index
    %c3_29 = arith.constant 3 : index
    %c0_30 = arith.constant 0 : index
    %c0_31 = arith.constant 0 : index
    %40 = vector.load %arg2[%c0_28, %c3_29, %c0_30, %c0_31] : memref<1x4x2x128xf32, #tpu.memory_space<vmem>>, vector<1x1x2x128xf32>
    %41 = vector.shape_cast %40 : vector<1x1x2x128xf32> to vector<1x2x128xf32>
    %42 = arith.subf %41, %11 : vector<1x2x128xf32>
    %43 = math.exp %42 : vector<1x2x128xf32>
    %44 = arith.addf %35, %43 : vector<1x2x128xf32>
    %c3_i32 = arith.constant 3 : i32
    %45 = vector.broadcast %c3_i32 : i32 to vector<1x2x128xi32>
    %46 = arith.cmpi eq, %0, %45 : vector<1x2x128xi32>
    %47 = arith.select %46, %42, %38 : vector<1x2x128xi1>, vector<1x2x128xf32>
    %48 = arith.select %46, %43, %39 : vector<1x2x128xi1>, vector<1x2x128xf32>
    %49 = math.log %44 : vector<1x2x128xf32>
    %50 = arith.subf %47, %49 : vector<1x2x128xf32>
    %51 = tpu.reciprocal %44 {approx = true} : vector<1x2x128xf32> -> vector<1x2x128xf32>
    %52 = arith.mulf %48, %51 : vector<1x2x128xf32>
    %cst_32 = arith.constant 1.000000e+00 : f32
    %53 = vector.broadcast %cst_32 : f32 to vector<1x2x128xf32>
    %54 = arith.subf %53, %52 : vector<1x2x128xf32>
    %cst_33 = arith.constant -1.000000e+00 : f32
    %55 = vector.broadcast %cst_33 : f32 to vector<1x2x128xf32>
    %56 = arith.mulf %55, %54 : vector<1x2x128xf32>
    %57 = arith.mulf %56, %50 : vector<1x2x128xf32>
    %58 = vector.shape_cast %57 : vector<1x2x128xf32> to vector<1x1x2x128xf32>
    %cst_34 = arith.constant dense<0.000000e+00> : vector<1xf32>
    %59 = vector.multi_reduction <add>, %58, %cst_34 [1, 2, 3] : vector<1x1x2x128xf32> to vector<1xf32>
    %60 = vector.shape_cast %59 : vector<1xf32> to vector<1x1x1x1xf32>
    %61 = vector.extract %60[0, 0, 0, 0] : f32 from vector<1x1x1x1xf32>
    %62 = vector.broadcast %61 : f32 to vector<1x1x1x1xf32>
    %c0_35 = arith.constant 0 : index
    %c0_36 = arith.constant 0 : index
    %c0_37 = arith.constant 0 : index
    %c0_38 = arith.constant 0 : index
    %63 = vector.load %arg4[%c0_35, %c0_36, %c0_37, %c0_38] : memref<1x1x1x1xf32, #tpu.memory_space<vmem>>, vector<1x1x1x1xf32>
    tpu.vector_store %arg4[%c0_35, %c0_36, %c0_37, %c0_38], %62 {strides = array<i32>} : memref<1x1x1x1xf32, #tpu.memory_space<vmem>>, vector<1x1x1x1xf32>,
    return
  }
  func.func @transform_0(%arg0: i32, %arg1: i32) -> (i32, i32, i32, i32) {
    %c0_i32 = arith.constant 0 : i32
    %c0_i32_0 = arith.constant 0 : i32
    %c0_i32_1 = arith.constant 0 : i32
    return %arg0, %c0_i32, %arg1, %c0_i32_0 : i32, i32, i32, i32
  }
  func.func @transform_1(%arg0: i32, %arg1: i32) -> (i32, i32, i32) {
    %c0_i32 = arith.constant 0 : i32
    %c0_i32_0 = arith.constant 0 : i32
    return %arg0, %arg1, %c0_i32 : i32, i32, i32
  }
  func.func @transform_2(%arg0: i32, %arg1: i32) -> (i32, i32, i32, i32) {
    %c0_i32 = arith.constant 0 : i32
    %c0_i32_0 = arith.constant 0 : i32
    %c0_i32_1 = arith.constant 0 : i32
    return %arg0, %arg1, %c0_i32, %c0_i32_0 : i32, i32, i32, i32
  }
}

</mosaic_0001>

<llo_original>
// kernel: tpu_custom_call.1
$region0: #{tpu_custom_call.1}
  #allocation0 [shape = 'u32[]', space=smem, size = 0x4, offset = 0x4, fixed_abs, tag = 'smem constant byte address 0x4 - core index']
  #allocation1 [shape = 'u32[72,128]{1,0:T(1,128)}', space=vmem, size = 0x9000, scoped, tag = 'internal scratch']
  %s0 = inlined_call_operand.hbm [shape: f32[2,4,2,128], index: 0, kind: input, shape index: {}]
  %s1 = inlined_call_operand.hbm [shape: s32[2,2,128], index: 1, kind: input, shape index: {}]
  %s2 = inlined_call_operand.vmem [shape: f32[2,1,1,1], index: 2, kind: output, shape index: {}]
  %s3 = sld [smem:[#allocation0]]
  $region49: #{tpu_custom_call.1} parent=0
    _
  %s5 = ssub.s32 1, %s3
  %s6 = scalar_select 0, %s5, %s3
  $region1: #{tpu_custom_call.1} parent=0
    #allocation2 [shape = 'u8[8192]{0}', space=vmem, size = 0x2000, scoped, tag = 'input window, operand 0']
    #allocation3 [shape = 's32[2]{0}', space=sflag, size = 0x8, scoped, tag = 'scoped memory for tpu_custom_call.1']
    #allocation4 [shape = 'u8[2048]{0}', space=vmem, size = 0x800, scoped, tag = 'input window, operand 1']
    #allocation5 [shape = 's32[2]{0}', space=sflag, size = 0x8, scoped, tag = 'scoped memory for tpu_custom_call.1']
    %7 = vsyncpa [#allocation3], 0
    %s8 = scalar_lea.sflag [#allocation3], 1
    %9 = vsyncpa %s8, 0
    %10 = vsyncpa [#allocation5], 0
    %s11 = scalar_lea.sflag [#allocation5], 1
    %12 = vsyncpa %s11, 0
    loop: start=0, step=1, limit=4
    $region2: #{tpu_custom_call.1} parent=1 // loop_pre_header
      _
    $region3: #{tpu_custom_call.1} parent=1 // loop_header
      %s14 = sphi 0, %s18
      %p15 = scmp.ge.s32.totalorder %s14, 4
      %s21 = sphi 0, %s33
      %s22 = sphi 0, %s29
      %s23 = sphi 0, %s21
      %s24 = sphi 0, %s22
      %s25 = sphi 0, %s23
      %s26 = sphi 0, %s24
      %s38 = sphi 0, %s40
      %s41 = sphi 0, %s38
      %s42 = sphi 0, %s41
      %s58 = sphi 0, %s42
      %s66 = sphi 0, %s68
      %s69 = sphi 0, %s66
      %s70 = sphi 0, %s69
      %s86 = sphi 0, %s70
      %s94 = sphi 0, %s96
      %s97 = sphi 0, %s94
      %s98 = sphi 0, %s97
      %s114 = sphi 0, %s98
    $region4: #{tpu_custom_call.1} parent=1 // loop_header_branch
      %17 = sbr.rel (%p15) target = $region8
    $region5: #{tpu_custom_call.1} parent=1 // loop_body
      %s19 = ssub.s32 %s14, 1
      %s20 = ssub.s32 %s14, 2
      %s27 = sadd.s32 1, %s22
      %p28 = scmp.ge.s32.totalorder %s27, 1
      %s29 = scalar_select %p28, 0, %s27
      %s30 = sadd.s32 1, %s21
      %s31 = scalar_select %p28, %s30, %s21
      %p32 = scmp.ge.s32.totalorder %s31, 2
      %s33 = scalar_select %p32, 0, %s31
      %s34 = ssub.s32 %s21, %s33
      %s35 = ssub.s32 %s22, %s29
      %s36 = sor.u32 %s34, %s35
      %p37 = scmp.eq.s32.totalorder %s36, 0
      %s39 = sadd.s32 %s38, 1
      %s40 = scalar_select %p37, %s38, %s39
      %p43 = pneg %p37
      %p44 = scmp.eq.s32.totalorder %s14, 1
      %p45 = por %p43, %p44
      %p46 = scmp.ne.s32.totalorder %s38, %s41
      %p47 = scmp.eq.s32.totalorder %s14, 0
      %p48 = por %p46, %p47
      %p49 = scmp.ne.s32.totalorder %s38, %s41
      %p50 = scmp.eq.s32.totalorder %s19, 1
      %p51 = por %p49, %p50
      %p52 = scmp.ne.s32.totalorder %s41, %s42
      %p53 = scmp.eq.s32.totalorder %s19, 0
      %p54 = por %p52, %p53
      %p55 = scmp.ne.s32.totalorder %s41, %s42
      %p56 = scmp.eq.s32.totalorder %s20, 1
      %p57 = por %p55, %p56
      %p59 = scmp.ne.s32.totalorder %s42, %s58
      %p60 = scmp.eq.s32.totalorder %s20, 0
      %p61 = por %p59, %p60
      %s62 = ssub.s32 %s21, %s33
      %s63 = ssub.s32 %s22, %s29
      %s64 = sor.u32 %s62, %s63
      %p65 = scmp.eq.s32.totalorder %s64, 0
      %s67 = sadd.s32 %s66, 1
      %s68 = scalar_select %p65, %s66, %s67
      %p71 = pneg %p65
      %p72 = scmp.eq.s32.totalorder %s14, 1
      %p73 = por %p71, %p72
      %p74 = scmp.ne.s32.totalorder %s66, %s69
      %p75 = scmp.eq.s32.totalorder %s14, 0
      %p76 = por %p74, %p75
      %p77 = scmp.ne.s32.totalorder %s66, %s69
      %p78 = scmp.eq.s32.totalorder %s19, 1
      %p79 = por %p77, %p78
      %p80 = scmp.ne.s32.totalorder %s69, %s70
      %p81 = scmp.eq.s32.totalorder %s19, 0
      %p82 = por %p80, %p81
      %p83 = scmp.ne.s32.totalorder %s69, %s70
      %p84 = scmp.eq.s32.totalorder %s20, 1
      %p85 = por %p83, %p84
      %p87 = scmp.ne.s32.totalorder %s70, %s86
      %p88 = scmp.eq.s32.totalorder %s20, 0
      %p89 = por %p87, %p88
      %s90 = ssub.s32 %s21, %s33
      %s91 = ssub.s32 %s22, %s29
      %s92 = sor.u32 %s90, %s91
      %p93 = scmp.eq.s32.totalorder %s92, 0
      %s95 = sadd.s32 %s94, 1
      %s96 = scalar_select %p93, %s94, %s95
      %p99 = pneg %p93
      %p100 = scmp.eq.s32.totalorder %s14, 1
      %p101 = por %p99, %p100
      %p102 = scmp.ne.s32.totalorder %s94, %s97
      %p103 = scmp.eq.s32.totalorder %s14, 0
      %p104 = por %p102, %p103
      %p105 = scmp.ne.s32.totalorder %s94, %s97
      %p106 = scmp.eq.s32.totalorder %s19, 1
      %p107 = por %p105, %p106
      %p108 = scmp.ne.s32.totalorder %s97, %s98
      %p109 = scmp.eq.s32.totalorder %s19, 0
      %p110 = por %p108, %p109
      %p111 = scmp.ne.s32.totalorder %s97, %s98
      %p112 = scmp.eq.s32.totalorder %s20, 1
      %p113 = por %p111, %p112
      %p115 = scmp.ne.s32.totalorder %s98, %s114
      %p116 = scmp.eq.s32.totalorder %s20, 0
      %p117 = por %p115, %p116
      %p118 = scmp.le.s32.totalorder 1, %s14
      %p119 = scmp.lt.s32.totalorder %s14, 3
      %p120 = pnand %p118, %p119
      %p121 = pneg %p120
      // Predicated region
      $region9: #{tpu_custom_call.1} parent=5 // pred_check
        _
      $region10: #{tpu_custom_call.1} parent=5 // pred_check_branch
        %123 = sbr.rel (%p120) target = $region12
      $region11: #{tpu_custom_call.1} parent=5 // pred_region
        %s124 = ssub.s32 %s14, 1
      $region12: #{tpu_custom_call.1} parent=5 // pred_fallthru
        _
      %p125 = scmp.lt.s32.totalorder %s14, 2
      // Predicated region
      $region13: #{tpu_custom_call.1} parent=5 // pred_check
        %p126 = pneg %p125
      $region14: #{tpu_custom_call.1} parent=5 // pred_check_branch
        %128 = sbr.rel (%p126) target = $region16
      $region15: #{tpu_custom_call.1} parent=5 // pred_region
        // Predicated region
        $region17: #{tpu_custom_call.1} parent=15 // pred_check
          %p129 = pneg %p48
        $region18: #{tpu_custom_call.1} parent=15 // pred_check_branch
          %131 = sbr.rel (%p129) target = $region20
        $region19: #{tpu_custom_call.1} parent=15 // pred_region
          %s132 = sand.u32 %s38, 1
          %s133 = scalar_lea.sflag [#allocation3], %s132
          %s134 = sand.u32 %s38, 1
          %s135 = smul.addr %s134, 8
          %s136 = scalar_lea.vmem [#allocation2], %s135
          %138 = vsyncadd %s133, 0
          %s139 = smul.addr %s21, 4
          %s140 = sadd.s32 %s22, %s139
          %s141 = smul.addr %s140, 2
          %s142 = scalar_lea.hbm %s0, %s141
          %s143 = sshll.u32 %s142, 4
          %s144 = int_to_ptr.hbm [resolvable:$true] %s143
          %s145 = sshll.u32 %s136, 4
          %s146 = int_to_ptr.vmem [resolvable:$true] %s145
          %151 = dma.hbm_to_vmem [thread:$0]  %s144, 128, %s146, %s133, 32, 32, 2
        $region20: #{tpu_custom_call.1} parent=15 // pred_fallthru
          _
        // Predicated region
        $region21: #{tpu_custom_call.1} parent=15 // pred_check
          %p152 = pneg %p76
        $region22: #{tpu_custom_call.1} parent=15 // pred_check_branch
          %154 = sbr.rel (%p152) target = $region24
        $region23: #{tpu_custom_call.1} parent=15 // pred_region
          %s155 = sand.u32 %s66, 1
          %s156 = scalar_lea.sflag [#allocation5], %s155
          %s157 = sand.u32 %s66, 1
          %s158 = smul.addr %s157, 2
          %s159 = scalar_lea.vmem [#allocation4], %s158
          %161 = vsyncadd %s156, 0
          %s162 = sadd.s32 %s22, %s21
          %s163 = smul.addr %s162, 2
          %s164 = scalar_lea.hbm %s1, %s163
          %s166 = sshll.u32 %s164, 4
          %s167 = int_to_ptr.hbm [resolvable:$true] %s166
          %s168 = sshll.u32 %s159, 4
          %s169 = int_to_ptr.vmem [resolvable:$true] %s168
          %171 = dma.hbm_to_vmem [thread:$0]  %s167, 32, %s169, %s156
        $region24: #{tpu_custom_call.1} parent=15 // pred_fallthru
          _
      $region16: #{tpu_custom_call.1} parent=5 // pred_fallthru
        _
      %p172 = scmp.le.s32.totalorder 1, %s14
      %p173 = scmp.lt.s32.totalorder %s14, 3
      %p174 = pnand %p172, %p173
      %p175 = pneg %p174
      // Predicated region
      $region25: #{tpu_custom_call.1} parent=5 // pred_check
        _
      $region26: #{tpu_custom_call.1} parent=5 // pred_check_branch
        %177 = sbr.rel (%p174) target = $region28
      $region27: #{tpu_custom_call.1} parent=5 // pred_region
        %s178 = ssub.s32 %s14, 1
        %s179 = sand.u32 %s41, 1
        %s180 = scalar_lea.sflag [#allocation3], %s179
        %s181 = sand.u32 %s41, 1
        %s182 = smul.addr %s181, 8
        %s183 = scalar_lea.vmem [#allocation2], %s182
        // Predicated region
        $region29: #{tpu_custom_call.1} parent=27 // pred_check
          %p184 = pneg %p54
        $region30: #{tpu_custom_call.1} parent=27 // pred_check_branch
          %186 = sbr.rel (%p184) target = $region32
        $region31: #{tpu_custom_call.1} parent=27 // pred_region
          %188 = dma.done %s180, 128
        $region32: #{tpu_custom_call.1} parent=27 // pred_fallthru
          _
        %s189 = sand.u32 %s69, 1
        %s190 = scalar_lea.sflag [#allocation5], %s189
        %s191 = sand.u32 %s69, 1
        %s192 = smul.addr %s191, 2
        %s193 = scalar_lea.vmem [#allocation4], %s192
        // Predicated region
        $region33: #{tpu_custom_call.1} parent=27 // pred_check
          %p194 = pneg %p82
        $region34: #{tpu_custom_call.1} parent=27 // pred_check_branch
          %196 = sbr.rel (%p194) target = $region36
        $region35: #{tpu_custom_call.1} parent=27 // pred_region
          %198 = dma.done %s190, 32
        $region36: #{tpu_custom_call.1} parent=27 // pred_fallthru
          _
        %s199 = sand.u32 %s41, 1
        %s200 = scalar_lea.sflag [#allocation3], %s199
        %s201 = sand.u32 %s41, 1
        %s202 = smul.addr %s201, 8
        %s203 = scalar_lea.vmem [#allocation2], %s202
        %p204 = pneg %p54
        %p205 = pneg %p51
        %s206 = sand.u32 %s69, 1
        %s207 = scalar_lea.sflag [#allocation5], %s206
        %s208 = sand.u32 %s69, 1
        %s209 = smul.addr %s208, 2
        %s210 = scalar_lea.vmem [#allocation4], %s209
        %p211 = pneg %p82
        %p212 = pneg %p79
        %p213 = pneg %p110
        %p214 = pneg %p107
        %p215 = scmp.lt.s32.totalorder %s23, 1
        %s216 = scalar_select %p215, %s23, 1
        %p217 = scmp.lt.s32.totalorder %s24, 0
        %s218 = scalar_select %p217, %s24, 0
        %s219 = sadd.s32 %s218, %s216
        %s220 = scalar_lea.vmem %s2, %s219
        %p221 = scmp.lt.s32.totalorder %s23, 1
        %s222 = scalar_select %p221, %s23, 1
        %p223 = scmp.lt.s32.totalorder %s24, 0
        %s224 = scalar_select %p223, %s24, 0
        %s225 = sadd.s32 %s224, %s222
        %s226 = scalar_lea.vmem %s2, %s225
        %v227 = vld [vmem:[%s193] sm:$0x3]
        %v228 = vld [vmem:[%s183] sm:$0x3]
        %s229 = scalar_lea.vmem %s183, 2 [#allocation2]
        %v230 = vld [vmem:[%s229] sm:$0x3]
        %v231 = vmax.f32 %v228, %v230
        %s232 = scalar_lea.vmem %s183, 4 [#allocation2]
        %v233 = vld [vmem:[%s232] sm:$0x3]
        %v234 = vmax.f32 %v231, %v233
        %s235 = scalar_lea.vmem %s183, 6 [#allocation2]
        %v236 = vld [vmem:[%s235] sm:$0x3]
        %v237 = vmax.f32 %v234, %v236
        %v238 = vsub.f32 %v228, %v237
        %v239 = vmul.f32 %v238, 1.442695
        %v240 = vpow.pop %v239
        %vm241 = vcmp.eq.s32.totalorder %v227, 0
        %v242 = vsel %vm241, %v238, 0.0
        %v243 = vsel %vm241, %v240, 0.0
        %v244 = vsub.f32 %v230, %v237
        %v245 = vmul.f32 %v244, 1.442695
        %v246 = vpow.pop %v245
        %v247 = vadd.f32 %v240, %v246
        %vm248 = vcmp.eq.s32.totalorder %v227, 1
        %v249 = vsel %vm248, %v244, %v242
        %v250 = vsel %vm248, %v246, %v243
        %v251 = vsub.f32 %v233, %v237
        %v252 = vmul.f32 %v251, 1.442695
        %v253 = vpow.pop %v252
        %v254 = vadd.f32 %v247, %v253
        %vm255 = vcmp.eq.s32.totalorder %v227, 2
        %v256 = vsel %vm255, %v251, %v249
        %v257 = vsel %vm255, %v253, %v250
        %v258 = vsub.f32 %v236, %v237
        %v259 = vmul.f32 %v258, 1.442695
        %v260 = vpow.pop %v259
        %v261 = vadd.f32 %v254, %v260
        %vm262 = vcmp.eq.s32.totalorder %v227, 3
        %v263 = vsel %vm262, %v258, %v256
        %v264 = vsel %vm262, %v260, %v257
        %v265 = vlog2.pop %v261
        %v266 = vmul.f32 %v265, 0.6931472
        %v267 = vsub.f32 %v263, %v266
        %v268 = vrcp.pop %v261
        %v269 = vmul.f32 %v264, %v268
        %v270 = vsub.f32 1.0, %v269
        %v271 = vmul.f32 %v270, -1.0
        %v272 = vmul.f32 %v271, %v267
        %vm273 = vcmask 1041408
        %v274 = vsel %vm273, %v272, 0.0
        %275 = vadd.xlane.f32.xlu0 %v274
        %v276 = vpop.xlane.xlu0 %275
        %v277 = vrot.slane %v276, 4
        %v278 = vadd.f32 %v276, %v277
        %v279 = vrot.slane %v278, 2
        %v280 = vadd.f32 %v278, %v279
        %v281 = vrot.slane %v280, 1
        %v282 = vadd.f32 %v280, %v281
        %s283 = vtos %v282
        %v284 = vstv %s283
        %vm285 = vcmask 0
        %286 = vst.msk [vmem:[%s226] sm:$0x1] %vm285, %v284
        %p287 = scmp.lt.s32.totalorder %s23, 1
        %s288 = scalar_select %p287, %s23, 1
        %p289 = scmp.lt.s32.totalorder %s24, 0
        %s290 = scalar_select %p289, %s24, 0
        %s291 = sadd.s32 %s290, %s288
        %s292 = scalar_lea.vmem %s2, %s291
        // Predicated region
        $region37: #{tpu_custom_call.1} parent=27 // pred_check
          %p293 = pneg %p107
        $region38: #{tpu_custom_call.1} parent=27 // pred_check_branch
          %295 = sbr.rel (%p293) target = $region40
        $region39: #{tpu_custom_call.1} parent=27 // pred_region
          _
        $region40: #{tpu_custom_call.1} parent=27 // pred_fallthru
          _
      $region28: #{tpu_custom_call.1} parent=5 // pred_fallthru
        _
      %p296 = scmp.le.s32.totalorder 2, %s14
      // Predicated region
      $region41: #{tpu_custom_call.1} parent=5 // pred_check
        %p297 = pneg %p296
      $region42: #{tpu_custom_call.1} parent=5 // pred_check_branch
        %299 = sbr.rel (%p297) target = $region44
      $region43: #{tpu_custom_call.1} parent=5 // pred_region
        %s300 = ssub.s32 %s14, 2
        // Predicated region
        $region45: #{tpu_custom_call.1} parent=43 // pred_check
          %p301 = pneg %p113
        $region46: #{tpu_custom_call.1} parent=43 // pred_check_branch
          %303 = sbr.rel (%p301) target = $region48
        $region47: #{tpu_custom_call.1} parent=43 // pred_region
          %p304 = scmp.lt.s32.totalorder %s25, 1
          %s305 = scalar_select %p304, %s25, 1
          %p306 = scmp.lt.s32.totalorder %s26, 0
          %s307 = scalar_select %p306, %s26, 0
          %s308 = sadd.s32 %s307, %s305
          %s309 = scalar_lea.vmem %s2, %s308
        $region48: #{tpu_custom_call.1} parent=43 // pred_fallthru
          _
      $region44: #{tpu_custom_call.1} parent=5 // pred_fallthru
        _
    $region6: #{tpu_custom_call.1} parent=1 // loop_footer
      %s18 = sadd.s32 1, %s14
    $region7: #{tpu_custom_call.1} parent=1 // loop_footer_branch
      %13 = sbr.rel target = $region3
    $region8: #{tpu_custom_call.1} parent=1 // loop_exit
      _
    %310 = vsyncpa [#allocation3], 1
    %s311 = scalar_lea.sflag [#allocation3], 1
    %312 = vsyncpa %s311, 1
    %313 = vsyncpa [#allocation5], 1
    %s314 = scalar_lea.sflag [#allocation5], 1
    %315 = vsyncpa %s314, 1

</llo_original>
